<compile_context>
chip_gen: v7x
topology: tpu7x:2x2x1
jax: 0.10.0
libtpu: 0.0.40
codegen_flags: <defaults>
</compile_context>

<pallas_src>
import functools

import jax
import jax.numpy as jnp
from jax.experimental import pallas as pl
from jax.experimental.pallas import tpu as pltpu


def _convblock_kernel(x_ref, w1_ref, b1_ref, w2_ref, b2_ref, o_ref,
                      *, K, L_TILE, compute_dtype):
    # x_ref : (1, Cin, L_pad)     full (zero-padded) sequence of one batch elem
    # w1_ref: (Cout, K*Cin)       conv1 weights, im2col layout
    # b1_ref: (Cout, 1)
    # w2_ref: (Cout, K*Cout)      conv2 weights, im2col layout
    # b2_ref: (Cout, 1)
    # o_ref : (1, Cout, L_TILE)   lane-dense output tile
    lt = pl.program_id(1)
    start = pl.multiple_of(lt * L_TILE, 128)   # lane-aligned tile start
    L_WIN = L_TILE + 128                       # aligned window (covers the halo)
    L1 = L_TILE + (K - 1)                      # conv1 outputs this tile needs

    # Aligned dynamic window load: (Cin, L_WIN).
    x_win = x_ref[0, :, pl.ds(start, L_WIN)]

    # ---- conv1: im2col + single matmul, bias folded into the ReLU ----
    # row (k*Cin + i) of x_col holds x[i, t + k]  -> matches w1_mat layout.
    x_col = jnp.concatenate([x_win[:, k:k + L1] for k in range(K)], axis=0)
    acc1 = jnp.dot(w1_ref[...], x_col.astype(compute_dtype),
                   preferred_element_type=jnp.float32)        # (Cout, L1)
    h = jnp.maximum(acc1 + b1_ref[...], 0.0)                  # f32

    # ---- conv2: im2col on h + single matmul + bias + ReLU ----
    h_col = jnp.concatenate([h[:, k:k + L_TILE] for k in range(K)], axis=0)
    acc2 = jnp.dot(w2_ref[...], h_col.astype(compute_dtype),
                   preferred_element_type=jnp.float32)        # (Cout, L_TILE)
    y = jnp.maximum(acc2 + b2_ref[...], 0.0)

    o_ref[0] = y.astype(o_ref.dtype)


def conv_block_pallas(x_ncl, w1, b1, w2, b2, kernel_size=3, *,
                      l_tile=512, compute_dtype=jnp.float32):
    """x_ncl: (N, Cin, L) PyTorch NCL layout.
       w1: (Cout, Cin, K), b1: (Cout,), w2: (Cout, Cout, K), b2: (Cout,)
       returns (N, Cout, L - 2*(K-1)) in NCL layout."""
    K = int(kernel_size)
    N, Cin, L = x_ncl.shape
    Cout = w1.shape[0]
    halo = 2 * (K - 1)
    L2 = L - halo
    assert L2 > 0
    assert halo <= 128, "aligned-window halo trick assumes 2*(K-1) <= 128"

    # Lane-aligned L tiling (output tile is a multiple of 128 lanes).
    L_TILE = max(128, min(int(l_tile), pl.cdiv(L2, 128) * 128))
    L_TILE = (L_TILE // 128) * 128
    num_tiles = pl.cdiv(L2, L_TILE)
    L2_pad = num_tiles * L_TILE
    L_pad = L2_pad + 128        # every window [start, start + L_TILE + 128) is in bounds

    x_p = jnp.pad(x_ncl, ((0, 0), (0, 0), (0, L_pad - L)))

    # im2col weight layout: column index = k*Cin + i  (k-major, channel-minor).
    w1_mat = jnp.transpose(w1, (0, 2, 1)).reshape(Cout, K * Cin).astype(compute_dtype)
    w2_mat = jnp.transpose(w2, (0, 2, 1)).reshape(Cout, K * Cout).astype(compute_dtype)
    b1_2d = b1.reshape(Cout, 1).astype(jnp.float32)
    b2_2d = b2.reshape(Cout, 1).astype(jnp.float32)

    kernel = functools.partial(_convblock_kernel, K=K, L_TILE=L_TILE,
                               compute_dtype=compute_dtype)

    out = pl.pallas_call(
        kernel,
        out_shape=jax.ShapeDtypeStruct((N, Cout, L2_pad), x_ncl.dtype),
        grid_spec=pltpu.PrefetchScalarGridSpec(
            num_scalar_prefetch=0,
            grid=(N, num_tiles),
            in_specs=[
                # full (padded) sequence of batch n; stays resident across L tiles
                pl.BlockSpec((1, Cin, L_pad), lambda n, lt: (n, 0, 0)),
                pl.BlockSpec((Cout, K * Cin), lambda n, lt: (0, 0)),
                pl.BlockSpec((Cout, 1), lambda n, lt: (0, 0)),
                pl.BlockSpec((Cout, K * Cout), lambda n, lt: (0, 0)),
                pl.BlockSpec((Cout, 1), lambda n, lt: (0, 0)),
            ],
            out_specs=pl.BlockSpec((1, Cout, L_TILE), lambda n, lt: (n, 0, lt)),
        ),
        compiler_params=pltpu.CompilerParams(
            dimension_semantics=("parallel", "parallel")),
    )(x_p, w1_mat, b1_2d, w2_mat, b2_2d)

    # Drop the padded tail (no-op when L2 is already a tile multiple).
    return out if L2_pad == L2 else out[:, :, :L2]


def _reference(x_ncl, w1, b1, w2, b2):
    """Plain-JAX reference (valid conv1d, NCL layout) matching nn.Conv1d."""
    def conv1d(x, w, b):
        y = jax.lax.conv_general_dilated(
            x, w, window_strides=(1,), padding="VALID",
            dimension_numbers=("NCH", "OIH", "NCH"))
        return y + b[None, :, None]
    h = jnp.maximum(conv1d(x_ncl, w1, b1), 0.0)
    return jnp.maximum(conv1d(h, w2, b2), 0.0)


if __name__ == "__main__":
    # Shapes consistent with ConvBlock: batch=2, in_channels=4, out_channels=8,
    # seq_len=16, kernel_size=3.
    N, Cin, Cout, L, K = 2, 4, 8, 16, 3

    key = jax.random.PRNGKey(0)
    kx, k1, kb1, k2, kb2 = jax.random.split(key, 5)

    x = jax.random.normal(kx, (N, Cin, L), dtype=jnp.float32)

    # PyTorch-style uniform(-1/sqrt(fan_in*K), ...) init.
    lim1 = 1.0 / jnp.sqrt(Cin * K)
    w1 = jax.random.uniform(k1, (Cout, Cin, K), jnp.float32, -lim1, lim1)
    b1 = jax.random.uniform(kb1, (Cout,), jnp.float32, -lim1, lim1)
    lim2 = 1.0 / jnp.sqrt(Cout * K)
    w2 = jax.random.uniform(k2, (Cout, Cout, K), jnp.float32, -lim2, lim2)
    b2 = jax.random.uniform(kb2, (Cout,), jnp.float32, -lim2, lim2)

    y_ref = _reference(x, w1, b1, w2, b2)

    # 1) f32 MXU path — exact-ish check.
    y32 = jax.block_until_ready(
        conv_block_pallas(x, w1, b1, w2, b2, kernel_size=K,
                          compute_dtype=jnp.float32))
    assert y32.shape == (N, Cout, L - 2 * (K - 1)), y32.shape
    assert jnp.allclose(y32, y_ref, atol=1e-5, rtol=1e-5), "f32 mismatch vs reference"

    # 2) bf16 MXU operands (f32 accumulation) — looser tolerance.
    ybf = jax.block_until_ready(
        conv_block_pallas(x, w1, b1, w2, b2, kernel_size=K,
                          compute_dtype=jnp.bfloat16))
    assert ybf.shape == y_ref.shape
    assert jnp.allclose(ybf, y_ref, atol=1e-1, rtol=5e-2), "bf16 mismatch vs reference"

    # 3) Multi-L-tile path (exercises halo handling / tiled output indexing).
    L_big = 300
    xb = jax.random.normal(jax.random.PRNGKey(1), (N, Cin, L_big), dtype=jnp.float32)
    yb = jax.block_until_ready(
        conv_block_pallas(xb, w1, b1, w2, b2, kernel_size=K,
                          l_tile=128, compute_dtype=jnp.float32))
    yb_ref = _reference(xb, w1, b1, w2, b2)
    assert yb.shape == (N, Cout, L_big - 2 * (K - 1)), yb.shape
    assert jnp.allclose(yb, yb_ref, atol=1e-5, rtol=1e-5), "tiled mismatch vs reference"

    print("KERNEL_OK")
</pallas_src>

<mosaic_0001>
module attributes {stable_mosaic.version = 11 : i64} {
  func.func @_convblock_kernel(%arg0: i32, %arg1: i32, %arg2: memref<1x4x256xf32, #tpu.memory_space<vmem>>, %arg3: memref<8x12xf32, #tpu.memory_space<vmem>>, %arg4: memref<8x1xf32, #tpu.memory_space<vmem>>, %arg5: memref<8x24xf32, #tpu.memory_space<vmem>>, %arg6: memref<8x1xf32, #tpu.memory_space<vmem>>, %arg7: memref<1x8x128xf32, #tpu.memory_space<vmem>>) attributes {dimension_semantics = [#tpu.dimension_semantics<parallel>, #tpu.dimension_semantics<parallel>], iteration_bounds = array<i64: 2, 1>, scalar_prefetch = 0 : i64, scratch_operands = 0 : i64, tpu.core_type = #tpu.core_type<tc>, window_params = [{transform_indices = @transform_0, window_bounds = array<i64: 1, 4, 256>}, {pipeline_mode = #tpu.pipeline_mode<synchronous>, transform_indices = @transform_1, window_bounds = array<i64: 8, 12>}, {pipeline_mode = #tpu.pipeline_mode<synchronous>, transform_indices = @transform_2, window_bounds = array<i64: 8, 1>}, {pipeline_mode = #tpu.pipeline_mode<synchronous>, transform_indices = @transform_3, window_bounds = array<i64: 8, 24>}, {pipeline_mode = #tpu.pipeline_mode<synchronous>, transform_indices = @transform_4, window_bounds = array<i64: 8, 1>}, {transform_indices = @transform_5, window_bounds = array<i64: 1, 8, 128>}]} {
    %c128_i32 = arith.constant 128 : i32
    %0 = arith.muli %arg1, %c128_i32 : i32
    %1 = tpu.assume_multiple %0, 128 : i32
    %c0 = arith.constant 0 : index
    %c0_0 = arith.constant 0 : index
    %2 = arith.index_cast %1 : i32 to index
    %3 = vector.load %arg2[%c0, %c0_0, %2] : memref<1x4x256xf32, #tpu.memory_space<vmem>>, vector<1x4x256xf32>
    %4 = vector.shape_cast %3 : vector<1x4x256xf32> to vector<4x256xf32>
    %5 = vector.extract_strided_slice %4 {offsets = [0, 0], sizes = [4, 130], strides = [1, 1]} : vector<4x256xf32> to vector<4x130xf32>
    %6 = vector.extract_strided_slice %4 {offsets = [0, 1], sizes = [4, 130], strides = [1, 1]} : vector<4x256xf32> to vector<4x130xf32>
    %7 = vector.extract_strided_slice %4 {offsets = [0, 2], sizes = [4, 130], strides = [1, 1]} : vector<4x256xf32> to vector<4x130xf32>
    %8 = tpu.concatenate %5, %6, %7 in 0 : vector<4x130xf32>, vector<4x130xf32>, vector<4x130xf32> -> vector<12x130xf32>
    %c0_1 = arith.constant 0 : index
    %c0_2 = arith.constant 0 : index
    %9 = vector.load %arg3[%c0_1, %c0_2] : memref<8x12xf32, #tpu.memory_space<vmem>>, vector<8x12xf32>
    %cst = arith.constant dense<0.000000e+00> : vector<8x130xf32>
    %10 = tpu.matmul %9, %8, %cst {dimension_numbers = #tpu.dot_dimension_numbers<[1], [0], [0], [1], [0, 0, 1, 1], [], []>} : vector<8x12xf32>, vector<12x130xf32>, vector<8x130xf32> -> vector<8x130xf32>
    %c0_3 = arith.constant 0 : index
    %c0_4 = arith.constant 0 : index
    %11 = vector.load %arg4[%c0_3, %c0_4] : memref<8x1xf32, #tpu.memory_space<vmem>>, vector<8x1xf32>
    %12 = vector.broadcast %11 : vector<8x1xf32> to vector<8x130xf32>
    %13 = arith.addf %10, %12 : vector<8x130xf32>
    %cst_5 = arith.constant 0.000000e+00 : f32
    %14 = vector.broadcast %cst_5 : f32 to vector<8x130xf32>
    %15 = arith.maximumf %13, %14 : vector<8x130xf32>
    %16 = vector.extract_strided_slice %15 {offsets = [0, 0], sizes = [8, 128], strides = [1, 1]} : vector<8x130xf32> to vector<8x128xf32>
    %17 = vector.extract_strided_slice %15 {offsets = [0, 1], sizes = [8, 128], strides = [1, 1]} : vector<8x130xf32> to vector<8x128xf32>
    %18 = vector.extract_strided_slice %15 {offsets = [0, 2], sizes = [8, 128], strides = [1, 1]} : vector<8x130xf32> to vector<8x128xf32>
    %19 = tpu.concatenate %16, %17, %18 in 0 : vector<8x128xf32>, vector<8x128xf32>, vector<8x128xf32> -> vector<24x128xf32>
    %c0_6 = arith.constant 0 : index
    %c0_7 = arith.constant 0 : index
    %20 = vector.load %arg5[%c0_6, %c0_7] : memref<8x24xf32, #tpu.memory_space<vmem>>, vector<8x24xf32>
    %cst_8 = arith.constant dense<0.000000e+00> : vector<8x128xf32>
    %21 = tpu.matmul %20, %19, %cst_8 {dimension_numbers = #tpu.dot_dimension_numbers<[1], [0], [0], [1], [0, 0, 1, 1], [], []>} : vector<8x24xf32>, vector<24x128xf32>, vector<8x128xf32> -> vector<8x128xf32>
    %c0_9 = arith.constant 0 : index
    %c0_10 = arith.constant 0 : index
    %22 = vector.load %arg6[%c0_9, %c0_10] : memref<8x1xf32, #tpu.memory_space<vmem>>, vector<8x1xf32>
    %23 = vector.broadcast %22 : vector<8x1xf32> to vector<8x128xf32>
    %24 = arith.addf %21, %23 : vector<8x128xf32>
    %cst_11 = arith.constant 0.000000e+00 : f32
    %25 = vector.broadcast %cst_11 : f32 to vector<8x128xf32>
    %26 = arith.maximumf %24, %25 : vector<8x128xf32>
    %c0_12 = arith.constant 0 : index
    %c0_13 = arith.constant 0 : index
    %c0_14 = arith.constant 0 : index
    %27 = vector.load %arg7[%c0_12, %c0_13, %c0_14] : memref<1x8x128xf32, #tpu.memory_space<vmem>>, vector<1x8x128xf32>
    %28 = vector.shape_cast %27 : vector<1x8x128xf32> to vector<8x128xf32>
    %29 = vector.shape_cast %26 : vector<8x128xf32> to vector<1x8x128xf32>
    tpu.vector_store %arg7[%c0_12, %c0_13, %c0_14], %29 {strides = array<i32>} : memref<1x8x128xf32, #tpu.memory_space<vmem>>, vector<1x8x128xf32>,
    return
  }
  func.func @transform_0(%arg0: i32, %arg1: i32) -> (i32, i32, i32) {
    %c0_i32 = arith.constant 0 : i32
    %c0_i32_0 = arith.constant 0 : i32
    %c0_i32_1 = arith.constant 0 : i32
    return %arg0, %c0_i32, %c0_i32_0 : i32, i32, i32
  }
  func.func @transform_1(%arg0: i32, %arg1: i32) -> (i32, i32) {
    %c0_i32 = arith.constant 0 : i32
    %c0_i32_0 = arith.constant 0 : i32
    %c0_i32_1 = arith.constant 0 : i32
    return %c0_i32, %c0_i32_0 : i32, i32
  }
  func.func @transform_2(%arg0: i32, %arg1: i32) -> (i32, i32) {
    %c0_i32 = arith.constant 0 : i32
    %c0_i32_0 = arith.constant 0 : i32
    %c0_i32_1 = arith.constant 0 : i32
    return %c0_i32, %c0_i32_0 : i32, i32
  }
  func.func @transform_3(%arg0: i32, %arg1: i32) -> (i32, i32) {
    %c0_i32 = arith.constant 0 : i32
    %c0_i32_0 = arith.constant 0 : i32
    %c0_i32_1 = arith.constant 0 : i32
    return %c0_i32, %c0_i32_0 : i32, i32
  }
  func.func @transform_4(%arg0: i32, %arg1: i32) -> (i32, i32) {
    %c0_i32 = arith.constant 0 : i32
    %c0_i32_0 = arith.constant 0 : i32
    %c0_i32_1 = arith.constant 0 : i32
    return %c0_i32, %c0_i32_0 : i32, i32
  }
  func.func @transform_5(%arg0: i32, %arg1: i32) -> (i32, i32, i32) {
    %c0_i32 = arith.constant 0 : i32
    %c0_i32_0 = arith.constant 0 : i32
    return %arg0, %c0_i32, %arg1 : i32, i32, i32
  }
}

</mosaic_0001>

<llo_original>
// kernel: tpu_custom_call.1
$region0: #{tpu_custom_call.1}
  #allocation0 [shape = 'u32[]', space=smem, size = 0x4, offset = 0x4, fixed_abs, tag = 'smem constant byte address 0x4 - core index']
  #allocation1 [shape = 'u32[144,128]{1,0:T(1,128)}', space=vmem, size = 0x12000, scoped, tag = 'internal scratch']
  %s0 = inlined_call_operand.vmem [shape: f32[2,4,256], index: 0, kind: input, shape index: {}]
  %s1 = inlined_call_operand.hbm [shape: f32[8,12], index: 1, kind: input, shape index: {}]
  %s2 = inlined_call_operand.vmem [shape: f32[8,1], index: 2, kind: input, shape index: {}]
  %s3 = inlined_call_operand.vmem [shape: f32[8,24], index: 3, kind: input, shape index: {}]
  %s4 = inlined_call_operand.vmem [shape: f32[8,1], index: 4, kind: input, shape index: {}]
  %s5 = inlined_call_operand.hbm [shape: f32[2,8,128], index: 5, kind: output, shape index: {}]
  %s6 = sld [smem:[#allocation0]]
  $region57: #{tpu_custom_call.1} parent=0
    _
  %s8 = ssub.s32 1, %s6
  %s9 = scalar_select 0, %s8, %s6
  $region1: #{tpu_custom_call.1} parent=0
    #allocation2 [shape = 'u8[4096]{0}', space=vmem, size = 0x1000, scoped, tag = 'input window, operand 1, single buffered']
    #allocation3 [shape = 's32[2]{0}', space=sflag, size = 0x8, scoped, tag = 'scoped memory for tpu_custom_call.1']
    #allocation4 [shape = 's32[2]{0}', space=sflag, size = 0x8, scoped, tag = 'scoped memory for tpu_custom_call.1']
    #allocation5 [shape = 'u8[8192]{0}', space=vmem, size = 0x2000, scoped, tag = 'output window, operand 0']
    %10 = vsyncpa [#allocation3], 0
    %11 = vsyncpa [#allocation4], 0
    %s12 = scalar_lea.sflag [#allocation4], 1
    %13 = vsyncpa %s12, 0
    loop: start=0, step=1, limit=4
    $region2: #{tpu_custom_call.1} parent=1 // loop_pre_header
      _
    $region3: #{tpu_custom_call.1} parent=1 // loop_header
      %s15 = sphi 0, %s19
      %p16 = scmp.ge.s32.totalorder %s15, 4
      %s22 = sphi 0, %s34
      %s23 = sphi 0, %s30
      %s24 = sphi 0, %s22
      %s25 = sphi 0, %s23
      %s26 = sphi 0, %s24
      %s27 = sphi 0, %s25
      %s37 = sphi 0, %s39
      %s40 = sphi 0, %s37
      %s41 = sphi 0, %s40
      %s57 = sphi 0, %s41
      %s61 = sphi 0, %s61
      %s63 = sphi 0, %s61
      %s64 = sphi 0, %s63
      %s78 = sphi 0, %s64
      %s82 = sphi 0, %s82
      %s84 = sphi 0, %s82
      %s85 = sphi 0, %s84
      %s99 = sphi 0, %s85
      %s103 = sphi 0, %s103
      %s105 = sphi 0, %s103
      %s106 = sphi 0, %s105
      %s120 = sphi 0, %s106
      %s124 = sphi 0, %s124
      %s126 = sphi 0, %s124
      %s127 = sphi 0, %s126
      %s141 = sphi 0, %s127
      %s149 = sphi 0, %s151
      %s152 = sphi 0, %s149
      %s153 = sphi 0, %s152
      %s169 = sphi 0, %s153
    $region4: #{tpu_custom_call.1} parent=1 // loop_header_branch
      %18 = sbr.rel (%p16) target = $region8
    $region5: #{tpu_custom_call.1} parent=1 // loop_body
      %s20 = ssub.s32 %s15, 1
      %s21 = ssub.s32 %s15, 2
      %s28 = sadd.s32 1, %s23
      %p29 = scmp.ge.s32.totalorder %s28, 1
      %s30 = scalar_select %p29, 0, %s28
      %s31 = sadd.s32 1, %s22
      %s32 = scalar_select %p29, %s31, %s22
      %p33 = scmp.ge.s32.totalorder %s32, 2
      %s34 = scalar_select %p33, 0, %s32
      %s35 = ssub.s32 %s22, %s34
      %p36 = scmp.eq.s32.totalorder %s35, 0
      %s38 = sadd.s32 %s37, 1
      %s39 = scalar_select %p36, %s37, %s38
      %p42 = pneg %p36
      %p43 = scmp.eq.s32.totalorder %s15, 1
      %p44 = por %p42, %p43
      %p45 = scmp.ne.s32.totalorder %s37, %s40
      %p46 = scmp.eq.s32.totalorder %s15, 0
      %p47 = por %p45, %p46
      %p48 = scmp.ne.s32.totalorder %s37, %s40
      %p49 = scmp.eq.s32.totalorder %s20, 1
      %p50 = por %p48, %p49
      %p51 = scmp.ne.s32.totalorder %s40, %s41
      %p52 = scmp.eq.s32.totalorder %s20, 0
      %p53 = por %p51, %p52
      %p54 = scmp.ne.s32.totalorder %s40, %s41
      %p55 = scmp.eq.s32.totalorder %s21, 1
      %p56 = por %p54, %p55
      %p58 = scmp.ne.s32.totalorder %s41, %s57
      %p59 = scmp.eq.s32.totalorder %s21, 0
      %p60 = por %p58, %p59
      %s62 = sadd.s32 %s61, 1
      %p65 = scmp.eq.s32.totalorder %s15, 1
      %p66 = scmp.ne.s32.totalorder %s61, %s63
      %p67 = scmp.eq.s32.totalorder %s15, 0
      %p68 = por %p66, %p67
      %p69 = scmp.ne.s32.totalorder %s61, %s63
      %p70 = scmp.eq.s32.totalorder %s20, 1
      %p71 = por %p69, %p70
      %p72 = scmp.ne.s32.totalorder %s63, %s64
      %p73 = scmp.eq.s32.totalorder %s20, 0
      %p74 = por %p72, %p73
      %p75 = scmp.ne.s32.totalorder %s63, %s64
      %p76 = scmp.eq.s32.totalorder %s21, 1
      %p77 = por %p75, %p76
      %p79 = scmp.ne.s32.totalorder %s64, %s78
      %p80 = scmp.eq.s32.totalorder %s21, 0
      %p81 = por %p79, %p80
      %s83 = sadd.s32 %s82, 1
      %p86 = scmp.eq.s32.totalorder %s15, 1
      %p87 = scmp.ne.s32.totalorder %s82, %s84
      %p88 = scmp.eq.s32.totalorder %s15, 0
      %p89 = por %p87, %p88
      %p90 = scmp.ne.s32.totalorder %s82, %s84
      %p91 = scmp.eq.s32.totalorder %s20, 1
      %p92 = por %p90, %p91
      %p93 = scmp.ne.s32.totalorder %s84, %s85
      %p94 = scmp.eq.s32.totalorder %s20, 0
      %p95 = por %p93, %p94
      %p96 = scmp.ne.s32.totalorder %s84, %s85
      %p97 = scmp.eq.s32.totalorder %s21, 1
      %p98 = por %p96, %p97
      %p100 = scmp.ne.s32.totalorder %s85, %s99
      %p101 = scmp.eq.s32.totalorder %s21, 0
      %p102 = por %p100, %p101
      %s104 = sadd.s32 %s103, 1
      %p107 = scmp.eq.s32.totalorder %s15, 1
      %p108 = scmp.ne.s32.totalorder %s103, %s105
      %p109 = scmp.eq.s32.totalorder %s15, 0
      %p110 = por %p108, %p109
      %p111 = scmp.ne.s32.totalorder %s103, %s105
      %p112 = scmp.eq.s32.totalorder %s20, 1
      %p113 = por %p111, %p112
      %p114 = scmp.ne.s32.totalorder %s105, %s106
      %p115 = scmp.eq.s32.totalorder %s20, 0
      %p116 = por %p114, %p115
      %p117 = scmp.ne.s32.totalorder %s105, %s106
      %p118 = scmp.eq.s32.totalorder %s21, 1
      %p119 = por %p117, %p118
      %p121 = scmp.ne.s32.totalorder %s106, %s120
      %p122 = scmp.eq.s32.totalorder %s21, 0
      %p123 = por %p121, %p122
      %s125 = sadd.s32 %s124, 1
      %p128 = scmp.eq.s32.totalorder %s15, 1
      %p129 = scmp.ne.s32.totalorder %s124, %s126
      %p130 = scmp.eq.s32.totalorder %s15, 0
      %p131 = por %p129, %p130
      %p132 = scmp.ne.s32.totalorder %s124, %s126
      %p133 = scmp.eq.s32.totalorder %s20, 1
      %p134 = por %p132, %p133
      %p135 = scmp.ne.s32.totalorder %s126, %s127
      %p136 = scmp.eq.s32.totalorder %s20, 0
      %p137 = por %p135, %p136
      %p138 = scmp.ne.s32.totalorder %s126, %s127
      %p139 = scmp.eq.s32.totalorder %s21, 1
      %p140 = por %p138, %p139
      %p142 = scmp.ne.s32.totalorder %s127, %s141
      %p143 = scmp.eq.s32.totalorder %s21, 0
      %p144 = por %p142, %p143
      %s145 = ssub.s32 %s22, %s34
      %s146 = ssub.s32 %s23, %s30
      %s147 = sor.u32 %s145, %s146
      %p148 = scmp.eq.s32.totalorder %s147, 0
      %s150 = sadd.s32 %s149, 1
      %s151 = scalar_select %p148, %s149, %s150
      %p154 = pneg %p148
      %p155 = scmp.eq.s32.totalorder %s15, 1
      %p156 = por %p154, %p155
      %p157 = scmp.ne.s32.totalorder %s149, %s152
      %p158 = scmp.eq.s32.totalorder %s15, 0
      %p159 = por %p157, %p158
      %p160 = scmp.ne.s32.totalorder %s149, %s152
      %p161 = scmp.eq.s32.totalorder %s20, 1
      %p162 = por %p160, %p161
      %p163 = scmp.ne.s32.totalorder %s152, %s153
      %p164 = scmp.eq.s32.totalorder %s20, 0
      %p165 = por %p163, %p164
      %p166 = scmp.ne.s32.totalorder %s152, %s153
      %p167 = scmp.eq.s32.totalorder %s21, 1
      %p168 = por %p166, %p167
      %p170 = scmp.ne.s32.totalorder %s153, %s169
      %p171 = scmp.eq.s32.totalorder %s21, 0
      %p172 = por %p170, %p171
      %p173 = scmp.le.s32.totalorder 1, %s15
      %p174 = scmp.lt.s32.totalorder %s15, 3
      %p175 = pnand %p173, %p174
      %p176 = pneg %p175
      // Predicated region
      $region9: #{tpu_custom_call.1} parent=5 // pred_check
        _
      $region10: #{tpu_custom_call.1} parent=5 // pred_check_branch
        %178 = sbr.rel (%p175) target = $region12
      $region11: #{tpu_custom_call.1} parent=5 // pred_region
        %s179 = ssub.s32 %s15, 1
        // Predicated region
        $region13: #{tpu_custom_call.1} parent=11 // pred_check
          %p180 = pneg %p74
        $region14: #{tpu_custom_call.1} parent=11 // pred_check_branch
          %182 = sbr.rel (%p180) target = $region16
        $region15: #{tpu_custom_call.1} parent=11 // pred_region
          %s184 = ssub.s32 128, 128
          %185 = vsyncadd [#allocation3], %s184
          %s187 = sshll.u32 [#allocation2], 4
          %s188 = int_to_ptr.vmem [resolvable:$true] %s187
          %190 = dma.hbm_to_vmem [thread:$0]  %s1, 128, %s188, [#allocation3]
        $region16: #{tpu_custom_call.1} parent=11 // pred_fallthru
          _
        // Predicated region
        $region17: #{tpu_custom_call.1} parent=11 // pred_check
          %p191 = pneg %p95
        $region18: #{tpu_custom_call.1} parent=11 // pred_check_branch
          %193 = sbr.rel (%p191) target = $region20
        $region19: #{tpu_custom_call.1} parent=11 // pred_region
          _
        $region20: #{tpu_custom_call.1} parent=11 // pred_fallthru
          _
        // Predicated region
        $region21: #{tpu_custom_call.1} parent=11 // pred_check
          %p194 = pneg %p116
        $region22: #{tpu_custom_call.1} parent=11 // pred_check_branch
          %196 = sbr.rel (%p194) target = $region24
        $region23: #{tpu_custom_call.1} parent=11 // pred_region
          _
        $region24: #{tpu_custom_call.1} parent=11 // pred_fallthru
          _
        // Predicated region
        $region25: #{tpu_custom_call.1} parent=11 // pred_check
          %p197 = pneg %p137
        $region26: #{tpu_custom_call.1} parent=11 // pred_check_branch
          %199 = sbr.rel (%p197) target = $region28
        $region27: #{tpu_custom_call.1} parent=11 // pred_region
          _
        $region28: #{tpu_custom_call.1} parent=11 // pred_fallthru
          _
      $region12: #{tpu_custom_call.1} parent=5 // pred_fallthru
        _
      %p200 = scmp.lt.s32.totalorder %s15, 2
      // Predicated region
      $region29: #{tpu_custom_call.1} parent=5 // pred_check
        %p201 = pneg %p200
      $region30: #{tpu_custom_call.1} parent=5 // pred_check_branch
        %203 = sbr.rel (%p201) target = $region32
      $region31: #{tpu_custom_call.1} parent=5 // pred_region
        // Predicated region
        $region33: #{tpu_custom_call.1} parent=31 // pred_check
          %p204 = pneg %p47
        $region34: #{tpu_custom_call.1} parent=31 // pred_check_branch
          %206 = sbr.rel (%p204) target = $region36
        $region35: #{tpu_custom_call.1} parent=31 // pred_region
          %p207 = scmp.lt.s32.totalorder %s22, 1
          %s208 = scalar_select %p207, %s22, 1
          %s209 = smul.addr %s208, 2
          %s210 = smul.addr %s209, 4
          %s211 = scalar_lea.vmem %s0, %s210
        $region36: #{tpu_custom_call.1} parent=31 // pred_fallthru
          _
      $region32: #{tpu_custom_call.1} parent=5 // pred_fallthru
        _
      %p212 = scmp.le.s32.totalorder 1, %s15
      %p213 = scmp.lt.s32.totalorder %s15, 3
      %p214 = pnand %p212, %p213
      %p215 = pneg %p214
      // Predicated region
      $region37: #{tpu_custom_call.1} parent=5 // pred_check
        _
      $region38: #{tpu_custom_call.1} parent=5 // pred_check_branch
        %217 = sbr.rel (%p214) target = $region40
      $region39: #{tpu_custom_call.1} parent=5 // pred_region
        %s218 = ssub.s32 %s15, 1
        // Predicated region
        $region41: #{tpu_custom_call.1} parent=39 // pred_check
          %p219 = pneg %p74
        $region42: #{tpu_custom_call.1} parent=39 // pred_check_branch
          %221 = sbr.rel (%p219) target = $region44
        $region43: #{tpu_custom_call.1} parent=39 // pred_region
          %222 = dma.done [#allocation3], 128
        $region44: #{tpu_custom_call.1} parent=39 // pred_fallthru
          _
        %p223 = scmp.lt.s32.totalorder %s24, 1
        %s224 = scalar_select %p223, %s24, 1
        %s225 = smul.addr %s224, 2
        %s226 = smul.addr %s225, 4
        %s227 = scalar_lea.vmem %s0, %s226
        %p228 = pneg %p53
        %p229 = pneg %p50
        %p230 = pneg %p74
        %p231 = pneg %p71
        %p232 = pneg %p95
        %p233 = pneg %p92
        %p234 = pneg %p116
        %p235 = pneg %p113
        %p236 = pneg %p137
        %p237 = pneg %p134
        %p238 = pneg %p165
        %p239 = pneg %p162
        %s240 = sand.u32 %s152, 1
        %s241 = scalar_lea.sflag [#allocation4], %s240
        %s242 = sand.u32 %s152, 1
        %s243 = smul.addr %s242, 8
        %s244 = scalar_lea.vmem [#allocation5], %s243
        %p245 = scmp.lt.s32.totalorder %s24, 1
        %s246 = scalar_select %p245, %s24, 1
        %s247 = smul.addr %s246, 2
        %s248 = smul.addr %s247, 4
        %s249 = scalar_lea.vmem %s0, %s248
        %s250 = smul.u32 %s25, 128
        %s251 = sshra.s32 %s250, 7
        %s252 = sand.u32 %s250, 127
        %s253 = smul.addr %s251, 4
        %s254 = scalar_lea.vmem %s249, %s253
        %v255 = vld [vmem:[%s254] sm:$0xff]
        %v257 = vcombine.high %v255, %v255
        %v259 = vcombine.low %v255, %v255
        %260 = vrot.lane.b32.xlu0 %v259, 127
        %v261 = vpop.permute.xlu0 %260
        %262 = vrot.lane.b32.xlu0 %v255, 127
        %v263 = vpop.permute.xlu0 %262
        %vm264 = vcmask 1039360
        %v265 = vsel %vm264, %v261, %v263
        %268 = vrot.lane.b32.xlu0 %v255, 126
        %v269 = vpop.permute.xlu0 %268
        %270 = vrot.lane.b32.xlu0 %v257, 126
        %v271 = vpop.permute.xlu0 %270
        %vm272 = vcmask 1031168
        %v273 = vsel %vm272, %v269, %v271
        %vm274 = vcmask 1043456
        %v275 = vsel %vm274, %v255, %v265
        %v276 = vsel %vm274, %v257, %v263
        %v277 = vld [vmem:[#allocation2] sm:$0xff]
        %v278 = vld [vmem:[%s2] sm:$0xff]
        %280 = vset.pattern.permute.xlu0 0
        %281 = vperm.xlu0 %280, %v278
        %v282 = vpop.permute.xlu0 %281
        %vm284 = vcmask 97280
        %v286 = vsel %vm284, %v277, 0
        %v288 = vsel %vm274, %v273, 0
        %v290 = vsel %vm274, %v271, 0
        %292 = vmatprep.subr.mxu0 %v276
        %293 = vmatpush1.msra.mxu0 %v275
        %294 = vmatprep.subr.mxu0 %v290
        %295 = vmatpush1.msra.mxu0 %v288
        %296 = vmatprep.subr.mxu0 0.0
        %297 = vmatpush1.msra.mxu0 0.0
        %298 = vmatprep.subr.mxu0 0.0
        %299 = vmatpush1.msra.mxu0 0.0
        %300 = vmatprep.subr.mxu0 0.0
        %301 = vmatpush1.msra.mxu0 0.0
        %302 = vmatprep.subr.mxu0 0.0
        %303 = vmatpush1.msra.mxu0 0.0
        %304 = vmatprep.subr.mxu0 0.0
        %305 = vmatpush1.msra.mxu0 0.0
        %306 = vmatprep.subr.mxu0 0.0
        %307 = vmatpush1.msra.mxu0 0.0
        %308 = vmatprep.subr.mxu0 0.0
        %309 = vmatpush1.msra.mxu0 0.0
        %310 = vmatprep.subr.mxu0 0.0
        %311 = vmatpush1.msra.mxu0 0.0
        %312 = vmatprep.subr.mxu0 0.0
        %313 = vmatpush1.msra.mxu0 0.0
        %314 = vmatprep.subr.mxu0 0.0
        %315 = vmatpush1.msra.mxu0 0.0
        %316 = vmatprep.subr.mxu0 0.0
        %317 = vmatpush1.msra.mxu0 0.0
        %318 = vmatprep.subr.mxu0 0.0
        %319 = vmatpush1.msra.mxu0 0.0
        %320 = vmatprep.subr.mxu0 0.0
        %321 = vmatpush1.msra.mxu0 0.0
        %322 = vmatprep.subr.mxu0 0.0
        %323 = vmatpush1.msra.mxu0 0.0
        %324 = vmatprep.subr.mxu0 0.0
        %325 = vmatpush1.msra.mxu0 0.0
        %326 = vmatprep.subr.mxu0 0.0
        %327 = vmatpush1.msra.mxu0 0.0
        %328 = vmatprep.subr.mxu0 0.0
        %329 = vmatpush1.msra.mxu0 0.0
        %330 = vmatprep.subr.mxu0 0.0
        %331 = vmatpush1.msra.mxu0 0.0
        %332 = vmatprep.subr.mxu0 0.0
        %333 = vmatpush1.msra.mxu0 0.0
        %334 = vmatprep.subr.mxu0 0.0
        %335 = vmatpush1.msra.mxu0 0.0
        %336 = vmatprep.subr.mxu0 0.0
        %337 = vmatpush1.msra.mxu0 0.0
        %338 = vmatprep.subr.mxu0 0.0
        %339 = vmatpush1.msra.mxu0 0.0
        %340 = vmatprep.subr.mxu0 0.0
        %341 = vmatpush1.msra.mxu0 0.0
        %342 = vmatprep.subr.mxu0 0.0
        %343 = vmatpush1.msra.mxu0 0.0
        %344 = vmatprep.subr.mxu0 0.0
        %345 = vmatpush1.msra.mxu0 0.0
        %346 = vmatprep.subr.mxu0 0.0
        %347 = vmatpush1.msra.mxu0 0.0
        %348 = vmatprep.subr.mxu0 0.0
        %349 = vmatpush1.msra.mxu0 0.0
        %350 = vmatprep.subr.mxu0 0.0
        %351 = vmatpush1.msra.mxu0 0.0
        %352 = vmatprep.subr.mxu0 0.0
        %353 = vmatpush1.msra.mxu0 0.0
        %354 = vmatprep.subr.mxu0 0.0
        %355 = vmatpush1.msra.mxu0 0.0
        %356 = vmatprep.mubr.f32.mxu0 0.0
        %357 = vmatmul.mubr.f32.gmra.mrb[0].mxu0 %v286
        %v358 = vpop.f32.mrb[0].mxu0
        %v359 = vadd.f32 %v282, %v358
        %v360 = vpop.f32.mrb[0].mxu0
        %v361 = vadd.f32 %v282, %v360
        %362 = vdwg.mxu0
        %v363 = vmax.f32 %v359, 0.0
        %v364 = vmax.f32 %v361, 0.0
        %367 = vrot.lane.b32.xlu0 %v363, 127
        %v368 = vpop.permute.xlu0 %367
        %369 = vrot.lane.b32.xlu0 %v364, 127
        %v370 = vpop.permute.xlu0 %369
        %v371 = vsel %vm264, %v368, %v370
        %373 = vrot.lane.b32.xlu0 %v363, 126
        %v374 = vpop.permute.xlu0 %373
        %375 = vrot.lane.b32.xlu0 %v364, 126
        %v376 = vpop.permute.xlu0 %375
        %v377 = vsel %vm272, %v374, %v376
        %v379 = vld [vmem:[%s3] sm:$0xff]
        %v380 = vld [vmem:[%s4] sm:$0xff]
        %382 = vset.pattern.permute.xlu0 0
        %383 = vperm.xlu0 %382, %v380
        %v384 = vpop.permute.xlu0 %383
        %vm386 = vcmask 195584
        %v388 = vsel %vm386, %v379, 0
        %390 = vmatprep.subr.mxu0 0.0
        %391 = vmatpush1.msra.mxu0 %v363
        %392 = vmatprep.subr.mxu0 0.0
        %393 = vmatpush1.msra.mxu0 %v371
        %394 = vmatprep.subr.mxu0 0.0
        %395 = vmatpush1.msra.mxu0 %v377
        %396 = vmatprep.subr.mxu0 0.0
        %397 = vmatpush1.msra.mxu0 0.0
        %398 = vmatprep.subr.mxu0 0.0
        %399 = vmatpush1.msra.mxu0 0.0
        %400 = vmatprep.subr.mxu0 0.0
        %401 = vmatpush1.msra.mxu0 0.0
        %402 = vmatprep.subr.mxu0 0.0
        %403 = vmatpush1.msra.mxu0 0.0
        %404 = vmatprep.subr.mxu0 0.0
        %405 = vmatpush1.msra.mxu0 0.0
        %406 = vmatprep.subr.mxu0 0.0
        %407 = vmatpush1.msra.mxu0 0.0
        %408 = vmatprep.subr.mxu0 0.0
        %409 = vmatpush1.msra.mxu0 0.0
        %410 = vmatprep.subr.mxu0 0.0
        %411 = vmatpush1.msra.mxu0 0.0
        %412 = vmatprep.subr.mxu0 0.0
        %413 = vmatpush1.msra.mxu0 0.0
        %414 = vmatprep.subr.mxu0 0.0
        %415 = vmatpush1.msra.mxu0 0.0
        %416 = vmatprep.subr.mxu0 0.0
        %417 = vmatpush1.msra.mxu0 0.0
        %418 = vmatprep.subr.mxu0 0.0
        %419 = vmatpush1.msra.mxu0 0.0
        %420 = vmatprep.subr.mxu0 0.0
        %421 = vmatpush1.msra.mxu0 0.0
        %422 = vmatprep.subr.mxu0 0.0
        %423 = vmatpush1.msra.mxu0 0.0
        %424 = vmatprep.subr.mxu0 0.0
        %425 = vmatpush1.msra.mxu0 0.0
        %426 = vmatprep.subr.mxu0 0.0
        %427 = vmatpush1.msra.mxu0 0.0
        %428 = vmatprep.subr.mxu0 0.0
        %429 = vmatpush1.msra.mxu0 0.0
        %430 = vmatprep.subr.mxu0 0.0
        %431 = vmatpush1.msra.mxu0 0.0
        %432 = vmatprep.subr.mxu0 0.0
        %433 = vmatpush1.msra.mxu0 0.0
        %434 = vmatprep.subr.mxu0 0.0
        %435 = vmatpush1.msra.mxu0 0.0
        %436 = vmatprep.subr.mxu0 0.0
        %437 = vmatpush1.msra.mxu0 0.0
        %438 = vmatprep.subr.mxu0 0.0
        %439 = vmatpush1.msra.mxu0 0.0
        %440 = vmatprep.subr.mxu0 0.0
        %441 = vmatpush1.msra.mxu0 0.0
        %442 = vmatprep.subr.mxu0 0.0
        %443 = vmatpush1.msra.mxu0 0.0
        %444 = vmatprep.subr.mxu0 0.0
        %445 = vmatpush1.msra.mxu0 0.0
        %446 = vmatprep.subr.mxu0 0.0
        %447 = vmatpush1.msra.mxu0 0.0
        %448 = vmatprep.subr.mxu0 0.0
        %449 = vmatpush1.msra.mxu0 0.0
        %450 = vmatprep.subr.mxu0 0.0
        %451 = vmatpush1.msra.mxu0 0.0
        %452 = vmatprep.subr.mxu0 0.0
        %453 = vmatpush1.msra.mxu0 0.0
        %454 = vmatprep.mubr.f32.mxu0 0.0
        %455 = vmatmul.mubr.f32.gmra.mrb[0].mxu0 %v388
        %v456 = vpop.f32.mrb[0].mxu0
        %v457 = vadd.f32 %v384, %v456
        %v458 = vpop.f32.mrb[0].mxu0
        %459 = vdwg.mxu0
        %v460 = vmax.f32 %v457, 0.0
        %461 = vst [vmem:[%s244] sm:$0xff] %v460
        %s462 = sand.u32 %s152, 1
        %s463 = scalar_lea.sflag [#allocation4], %s462
        %s464 = sand.u32 %s152, 1
        %s465 = smul.addr %s464, 8
        %s466 = scalar_lea.vmem [#allocation5], %s465
        // Predicated region
        $region45: #{tpu_custom_call.1} parent=39 // pred_check
          %p467 = pneg %p162
        $region46: #{tpu_custom_call.1} parent=39 // pred_check_branch
          %469 = sbr.rel (%p467) target = $region48
        $region47: #{tpu_custom_call.1} parent=39 // pred_region
          %s471 = ssub.s32 128, 128
          %472 = vsyncadd %s463, %s471
          %s473 = sadd.s32 %s25, %s24
          %s474 = smul.addr %s473, 128
          %s475 = scalar_lea.hbm %s5, %s474
          %s477 = sshll.u32 %s466, 4
          %s478 = int_to_ptr.vmem [resolvable:$true] %s477
          %480 = dma.vmem_to_hbm [thread:$0]  %s478, 128, %s475, %s463
        $region48: #{tpu_custom_call.1} parent=39 // pred_fallthru
          _
      $region40: #{tpu_custom_call.1} parent=5 // pred_fallthru
        _
      %p481 = scmp.le.s32.totalorder 2, %s15
      // Predicated region
      $region49: #{tpu_custom_call.1} parent=5 // pred_check
        %p482 = pneg %p481
      $region50: #{tpu_custom_call.1} parent=5 // pred_check_branch
        %484 = sbr.rel (%p482) target = $region52
      $region51: #{tpu_custom_call.1} parent=5 // pred_region
        %s485 = ssub.s32 %s15, 2
        // Predicated region
        $region53: #{tpu_custom_call.1} parent=51 // pred_check
          %p486 = pneg %p168
        $region54: #{tpu_custom_call.1} parent=51 // pred_check_branch
          %488 = sbr.rel (%p486) target = $region56
        $region55: #{tpu_custom_call.1} parent=51 // pred_region
          %s489 = sand.u32 %s153, 1
          %s490 = scalar_lea.sflag [#allocation4], %s489
          %s491 = sand.u32 %s153, 1
          %s492 = smul.addr %s491, 8
          %s493 = scalar_lea.vmem [#allocation5], %s492
          %494 = dma.done %s490, 128
        $region56: #{tpu_custom_call.1} parent=51 // pred_fallthru
          _
      $region52: #{tpu_custom_call.1} parent=5 // pred_fallthru
        _
    $region6: #{tpu_custom_call.1} parent=1 // loop_footer
      %s19 = sadd.s32 1, %s15
    $region7: #{tpu_custom_call.1} parent=1 // loop_footer_branch
      %14 = sbr.rel target = $region3
    $region8: #{tpu_custom_call.1} parent=1 // loop_exit
      _
    %495 = vsyncpa [#allocation3], 1
    %s496 = scalar_lea.sflag [#allocation3], 1
    %497 = vsyncpa %s496, 1
    %498 = vsyncpa [#allocation4], 1
    %s499 = scalar_lea.sflag [#allocation4], 1
    %500 = vsyncpa %s499, 1

</llo_original>
